<compile_context>
chip_gen: v6e
topology: v6e:2x2x1
jax: 0.10.0
libtpu: 0.0.40
codegen_flags: <defaults>
</compile_context>

<pallas_src>
import functools

import jax
import jax.numpy as jnp
from jax import lax
from jax.experimental import pallas as pl
from jax.experimental.pallas import tpu as pltpu

# Finite stand-in for -inf: exp() underflows to exactly 0 in f32, but a fully
# padded/masked row could never produce inf-inf -> NaN.
_MASK_BIAS = -1e30


def _att_heads_kernel(x_ref, w_ref, bias_ref, o_ref, *, num_heads, head_size):
    # x_ref:    (B*S, E)           native dtype
    # w_ref:    (E, 3*nh*H)        Q block pre-scaled by 1/sqrt(E)
    # bias_ref: (B*S, B*S) f32     additive block-diagonal causal bias
    # o_ref:    (B*S, nh*H)        lane-dense once nh*H is a multiple of 128
    x = x_ref[...]
    w = w_ref[...]
    bias = bias_ref[...]
    H, nh = head_size, num_heads
    W = nh * H

    # Fused QKV projection for ALL heads: one MXU matmul, f32 accumulation.
    qkv = jnp.dot(x, w, preferred_element_type=jnp.float32)       # (BS, 3W) f32

    q = qkv[:, :W]            # 1/sqrt(E) already folded into the weight
    k = qkv[:, W:2 * W]
    v = qkv[:, 2 * W:]

    outs = []
    for h in range(nh):       # static unroll; nh is a trace-time constant
        sl = slice(h * H, (h + 1) * H)
        qh = q[:, sl].astype(x.dtype)
        kh = k[:, sl].astype(x.dtype)
        vh = v[:, sl].astype(x.dtype)

        # Scores: contract over the last dim of both operands (no k.T
        # materialization), f32 accumulation on the MXU.
        att = lax.dot_general(qh, kh,
                              dimension_numbers=(((1,), (1,)), ((), ())),
                              preferred_element_type=jnp.float32)  # (BS, BS)

        # Precomputed additive causal / block-diagonal bias: one vadd.
        att = att + bias

        # Numerically stable softmax in f32; reciprocal on the EUP slot.
        m = jnp.max(att, axis=-1, keepdims=True)
        p = jnp.exp(att - m)
        denom = jnp.sum(p, axis=-1, keepdims=True)
        p = p * pl.reciprocal(denom, approx=True)

        # Dropout(p=0.2): eval-mode identity.

        outs.append(jnp.dot(p.astype(x.dtype), vh,
                            preferred_element_type=jnp.float32))   # (BS, H) f32

    # One full-width store (lane-dense when nh*H is a multiple of 128).
    out = outs[0] if nh == 1 else jnp.concatenate(outs, axis=-1)   # (BS, W) f32
    o_ref[...] = out.astype(o_ref.dtype)


def fuse_qkv_weights(wqs, wks, wvs):
    """Build the fused (E, 3*nh*H) QKV weight ONCE (hoist out of the call path).

    wqs/wks/wvs: per-head (E, H) projections, i.e. the TRANSPOSE of the torch
    nn.Linear .weight. 1/sqrt(E) is folded into the Q block here (in f32,
    before casting back to the weight dtype), removing a per-call VALU mul.
    """
    E = wqs[0].shape[0]
    dtype = wqs[0].dtype
    scale = jnp.float32(E) ** -0.5
    q = jnp.concatenate([w.astype(jnp.float32) * scale for w in wqs], axis=1)
    k = jnp.concatenate([w.astype(jnp.float32) for w in wks], axis=1)
    v = jnp.concatenate([w.astype(jnp.float32) for w in wvs], axis=1)
    return jnp.concatenate([q, k, v], axis=1).astype(dtype)        # (E, 3*nh*H)


def causal_block_bias(batch, seq):
    """(B*S, B*S) additive bias: 0 where (same batch element AND key<=query),
    else a large finite negative. Build once per (batch, seq) and reuse."""
    bs = batch * seq
    idx = jnp.arange(bs)
    same = (idx[:, None] // seq) == (idx[None, :] // seq)
    causal = (idx[:, None] % seq) >= (idx[None, :] % seq)
    return jnp.where(same & causal, 0.0, _MASK_BIAS).astype(jnp.float32)


def fused_att_heads(x, w_qkv, bias, *, num_heads, head_size):
    """x: (B, S, E); w_qkv from fuse_qkv_weights; bias from causal_block_bias.

    Returns (B, S, nh*H): all heads' outputs concatenated on the feature dim.
    """
    B, S, E = x.shape
    W = num_heads * head_size
    x_flat = x.reshape(B * S, E)

    kernel = functools.partial(_att_heads_kernel,
                               num_heads=num_heads, head_size=head_size)
    out_flat = pl.pallas_call(
        kernel,
        out_shape=jax.ShapeDtypeStruct((B * S, W), x.dtype),
        in_specs=[pl.BlockSpec(memory_space=pltpu.MemorySpace.VMEM),
                  pl.BlockSpec(memory_space=pltpu.MemorySpace.VMEM),
                  pl.BlockSpec(memory_space=pltpu.MemorySpace.VMEM)],
        out_specs=pl.BlockSpec(memory_space=pltpu.MemorySpace.VMEM),
    )(x_flat, w_qkv, bias)
    return out_flat.reshape(B, S, W)


def att_head(x, wq, wk, wv):
    """Exact AttHead.forward (eval mode): x (B,S,E), wq/wk/wv (E,H) -> (B,S,H).

    Convenience wrapper; production callers should build the fused weight and
    bias once (fuse_qkv_weights / causal_block_bias) and call fused_att_heads
    directly so the concat/scale never sit on the per-call path.
    """
    B, S, _ = x.shape
    H = wq.shape[1]
    w_qkv = fuse_qkv_weights([wq], [wk], [wv])
    bias = causal_block_bias(B, S)
    return fused_att_heads(x, w_qkv, bias, num_heads=1, head_size=H)


def att_head_ref(x, wq, wk, wv):
    """Pure-JAX f32 reference matching the PyTorch forward (eval-mode dropout)."""
    _, S, E = x.shape
    q = x @ wq
    k = x @ wk
    v = x @ wv
    att = (q @ jnp.swapaxes(k, -2, -1)) * (E ** -0.5)
    mask = jnp.tril(jnp.ones((S, S), dtype=bool))
    att = jnp.where(mask, att, -jnp.inf)
    att = jax.nn.softmax(att, axis=-1)
    return att @ v


if __name__ == "__main__":
    # Module-consistent small shapes: emd_dim=32, context_size=8, head_size=16.
    B, S, E, H = 2, 8, 32, 16
    NH = 8  # fused demo: 3*NH*H = 384-wide QKV matmul, 128-wide lane-dense out

    key = jax.random.PRNGKey(0)
    kx, kw = jax.random.split(key)

    # bf16 inputs: native MXU dtype (accumulation stays f32 inside the kernel).
    x = jax.random.normal(kx, (B, S, E), dtype=jnp.float32).astype(jnp.bfloat16)
    bound = 1.0 / (E ** 0.5)
    wkeys = jax.random.split(kw, 3 * NH)
    ws = [jax.random.uniform(k_, (E, H), minval=-bound, maxval=bound,
                             dtype=jnp.float32).astype(jnp.bfloat16)
          for k_ in wkeys]
    wqs, wks, wvs = ws[:NH], ws[NH:2 * NH], ws[2 * NH:]

    xf = x.astype(jnp.float32)
    f32 = lambda w: w.astype(jnp.float32)

    # --- 1. Single head: exact AttHead.forward semantics. -------------------
    out1 = jax.block_until_ready(att_head(x, wqs[0], wks[0], wvs[0]))
    ref1 = att_head_ref(xf, f32(wqs[0]), f32(wks[0]), f32(wvs[0]))
    assert out1.shape == (B, S, H)
    assert jnp.allclose(out1.astype(jnp.float32), ref1, atol=4e-2, rtol=4e-2), \
        "single-head mismatch vs reference"

    # --- 2. All NH heads of a layer fused into ONE pallas_call. --------------
    w_qkv = fuse_qkv_weights(wqs, wks, wvs)   # built ONCE (hoisted)
    bias = causal_block_bias(B, S)            # built ONCE (hoisted)
    apply_heads = jax.jit(functools.partial(fused_att_heads,
                                            num_heads=NH, head_size=H))
    out_nh = jax.block_until_ready(apply_heads(x, w_qkv, bias))
    ref_nh = jnp.concatenate(
        [att_head_ref(xf, f32(wqs[h]), f32(wks[h]), f32(wvs[h]))
         for h in range(NH)], axis=-1)
    assert out_nh.shape == (B, S, NH * H)
    assert jnp.allclose(out_nh.astype(jnp.float32), ref_nh,
                        atol=4e-2, rtol=4e-2), \
        "fused multi-head mismatch vs reference"

    print("KERNEL_OK")
</pallas_src>

<mosaic_0001>
module attributes {stable_mosaic.version = 11 : i64} {
  func.func @_att_heads_kernel(%arg0: memref<16x32xbf16, #tpu.memory_space<vmem>>, %arg1: memref<32x48xbf16, #tpu.memory_space<vmem>>, %arg2: memref<16x16xf32, #tpu.memory_space<vmem>>, %arg3: memref<16x16xbf16, #tpu.memory_space<vmem>>) attributes {dimension_semantics = [], scalar_prefetch = 0 : i64, scratch_operands = 0 : i64, tpu.core_type = #tpu.core_type<tc>} {
    %c0 = arith.constant 0 : index
    %c0_0 = arith.constant 0 : index
    %0 = vector.load %arg0[%c0, %c0_0] : memref<16x32xbf16, #tpu.memory_space<vmem>>, vector<16x32xbf16>
    %c0_1 = arith.constant 0 : index
    %c0_2 = arith.constant 0 : index
    %1 = vector.load %arg1[%c0_1, %c0_2] : memref<32x48xbf16, #tpu.memory_space<vmem>>, vector<32x48xbf16>
    %c0_3 = arith.constant 0 : index
    %c0_4 = arith.constant 0 : index
    %2 = vector.load %arg2[%c0_3, %c0_4] : memref<16x16xf32, #tpu.memory_space<vmem>>, vector<16x16xf32>
    %cst = arith.constant dense<0.000000e+00> : vector<16x48xf32>
    %3 = tpu.matmul %0, %1, %cst {dimension_numbers = #tpu.dot_dimension_numbers<[1], [0], [0], [1], [0, 0, 1, 1], [], []>} : vector<16x32xbf16>, vector<32x48xbf16>, vector<16x48xf32> -> vector<16x48xf32>
    %4 = vector.extract_strided_slice %3 {offsets = [0, 0], sizes = [16, 16], strides = [1, 1]} : vector<16x48xf32> to vector<16x16xf32>
    %5 = vector.extract_strided_slice %3 {offsets = [0, 16], sizes = [16, 16], strides = [1, 1]} : vector<16x48xf32> to vector<16x16xf32>
    %6 = vector.extract_strided_slice %3 {offsets = [0, 32], sizes = [16, 16], strides = [1, 1]} : vector<16x48xf32> to vector<16x16xf32>
    %7 = arith.truncf %4 : vector<16x16xf32> to vector<16x16xbf16>
    %8 = arith.truncf %5 : vector<16x16xf32> to vector<16x16xbf16>
    %9 = arith.truncf %6 : vector<16x16xf32> to vector<16x16xbf16>
    %cst_5 = arith.constant dense<0.000000e+00> : vector<16x16xf32>
    %10 = tpu.matmul %7, %8, %cst_5 {dimension_numbers = #tpu.dot_dimension_numbers<[1], [1], [0], [0], [0, 0, 1, 0], [], []>} : vector<16x16xbf16>, vector<16x16xbf16>, vector<16x16xf32> -> vector<16x16xf32>
    %11 = arith.addf %10, %2 : vector<16x16xf32>
    %cst_6 = arith.constant dense<0xFF800000> : vector<16xf32>
    %12 = vector.multi_reduction <maximumf>, %11, %cst_6 [1] : vector<16x16xf32> to vector<16xf32>
    %13 = vector.shape_cast %12 : vector<16xf32> to vector<16x1xf32>
    %14 = vector.broadcast %13 : vector<16x1xf32> to vector<16x16xf32>
    %15 = arith.subf %11, %14 : vector<16x16xf32>
    %16 = math.exp %15 : vector<16x16xf32>
    %cst_7 = arith.constant dense<0.000000e+00> : vector<16xf32>
    %17 = vector.multi_reduction <add>, %16, %cst_7 [1] : vector<16x16xf32> to vector<16xf32>
    %18 = vector.shape_cast %17 : vector<16xf32> to vector<16x1xf32>
    %19 = tpu.reciprocal %18 {approx = true} : vector<16x1xf32> -> vector<16x1xf32>
    %20 = vector.broadcast %19 : vector<16x1xf32> to vector<16x16xf32>
    %21 = arith.mulf %16, %20 : vector<16x16xf32>
    %22 = arith.truncf %21 : vector<16x16xf32> to vector<16x16xbf16>
    %cst_8 = arith.constant dense<0.000000e+00> : vector<16x16xf32>
    %23 = tpu.matmul %22, %9, %cst_8 {dimension_numbers = #tpu.dot_dimension_numbers<[1], [0], [0], [1], [0, 0, 1, 1], [], []>} : vector<16x16xbf16>, vector<16x16xbf16>, vector<16x16xf32> -> vector<16x16xf32>
    %24 = arith.truncf %23 : vector<16x16xf32> to vector<16x16xbf16>
    %c0_9 = arith.constant 0 : index
    %c0_10 = arith.constant 0 : index
    %25 = vector.load %arg3[%c0_9, %c0_10] : memref<16x16xbf16, #tpu.memory_space<vmem>>, vector<16x16xbf16>
    tpu.vector_store %arg3[%c0_9, %c0_10], %24 {strides = array<i32>} : memref<16x16xbf16, #tpu.memory_space<vmem>>, vector<16x16xbf16>,
    return
  }
}

</mosaic_0001>

<llo_original>
// kernel: tpu_custom_call.1
$region0: #{tpu_custom_call.1}
  #allocation0 [shape = 'u32[]', space=smem, size = 0x4, offset = 0x4, fixed_abs, tag = 'smem constant byte address 0x4 - core index']
  #allocation1 [shape = 'u32[144,128]{1,0:T(1,128)}', space=vmem, size = 0x12000, scoped, tag = 'internal scratch']
  %s0 = inlined_call_operand.hbm [shape: bf16[16,32], index: 0, kind: input, shape index: {}]
  %s1 = inlined_call_operand.hbm [shape: bf16[32,48], index: 1, kind: input, shape index: {}]
  %s2 = inlined_call_operand.hbm [shape: f32[16,16], index: 2, kind: input, shape index: {}]
  %s3 = inlined_call_operand.hbm [shape: bf16[16,16], index: 3, kind: output, shape index: {}]
  %s4 = sld [smem:[#allocation0]]
  $region34: #{tpu_custom_call.1} parent=0
    _
  %s6 = ssub.s32 1, %s4
  %s7 = scalar_select 0, %s6, %s4
  $region1: #{tpu_custom_call.1} parent=0
    #allocation2 [shape = 'u8[4096]{0}', space=vmem, size = 0x1000, scoped, tag = 'input window, operand 0, single buffered']
    #allocation3 [shape = 's32[1]{0}', space=sflag, size = 0x4, scoped, tag = 'scoped memory for tpu_custom_call.1']
    #allocation4 [shape = 's32[1]{0}', space=sflag, size = 0x4, scoped, tag = 'scoped memory for tpu_custom_call.1']
    #allocation5 [shape = 'u8[8192]{0}', space=vmem, size = 0x2000, scoped, tag = 'input window, operand 1, single buffered']
    #allocation6 [shape = 's32[1]{0}', space=sflag, size = 0x4, scoped, tag = 'scoped memory for tpu_custom_call.1']
    #allocation7 [shape = 'u8[8192]{0}', space=vmem, size = 0x2000, scoped, tag = 'input window, operand 2, single buffered']
    #allocation8 [shape = 'u8[4096]{0}', space=vmem, size = 0x1000, scoped, tag = 'output window, operand 0, single buffered']
    %8 = vsyncpa [#allocation3], 0
    %9 = vsyncpa [#allocation6], 0
    %10 = vsyncpa [#allocation4], 0
    // Predicated region
    $region2: #{tpu_custom_call.1} parent=1 // pred_check
      _
    $region3: #{tpu_custom_call.1} parent=1 // pred_check_branch
      %12 = sbr.rel (0) target = $region5
    $region4: #{tpu_custom_call.1} parent=1 // pred_region
      %s14 = ssub.s32 128, 128
      %15 = vsyncadd [#allocation3], %s14
      %s16 = sshll.u32 [#allocation2], 4
      %s17 = int_to_ptr.vmem [resolvable:$true] %s16
      %22 = dma.hbm_to_vmem [thread:$0]  %s0, 128, %s17, [#allocation3], 64, 64, 4
    $region5: #{tpu_custom_call.1} parent=1 // pred_fallthru
      _
    // Predicated region
    $region6: #{tpu_custom_call.1} parent=1 // pred_check
      _
    $region7: #{tpu_custom_call.1} parent=1 // pred_check_branch
      %24 = sbr.rel (0) target = $region9
    $region8: #{tpu_custom_call.1} parent=1 // pred_region
      %s26 = ssub.s32 256, 256
      %27 = vsyncadd [#allocation6], %s26
      %s28 = sshll.u32 [#allocation5], 4
      %s29 = int_to_ptr.vmem [resolvable:$true] %s28
      %34 = dma.hbm_to_vmem [thread:$0]  %s1, 256, %s29, [#allocation6], 64, 64, 4
    $region9: #{tpu_custom_call.1} parent=1 // pred_fallthru
      _
    // Predicated region
    $region10: #{tpu_custom_call.1} parent=1 // pred_check
      _
    $region11: #{tpu_custom_call.1} parent=1 // pred_check_branch
      %36 = sbr.rel (0) target = $region13
    $region12: #{tpu_custom_call.1} parent=1 // pred_region
      %s38 = ssub.s32 256, 256
      %39 = vsyncadd [#allocation6], %s38
      %s40 = sshll.u32 [#allocation7], 4
      %s41 = int_to_ptr.vmem [resolvable:$true] %s40
      %46 = dma.hbm_to_vmem [thread:$0]  %s2, 256, %s41, [#allocation6], 128, 128, 8
    $region13: #{tpu_custom_call.1} parent=1 // pred_fallthru
      _
    // Predicated region
    $region14: #{tpu_custom_call.1} parent=1 // pred_check
      _
    $region15: #{tpu_custom_call.1} parent=1 // pred_check_branch
      %48 = sbr.rel (0) target = $region17
    $region16: #{tpu_custom_call.1} parent=1 // pred_region
      %49 = dma.done [#allocation3], 128
    $region17: #{tpu_custom_call.1} parent=1 // pred_fallthru
      _
    // Predicated region
    $region18: #{tpu_custom_call.1} parent=1 // pred_check
      _
    $region19: #{tpu_custom_call.1} parent=1 // pred_check_branch
      %51 = sbr.rel (0) target = $region21
    $region20: #{tpu_custom_call.1} parent=1 // pred_region
      %52 = dma.done [#allocation6], 256
    $region21: #{tpu_custom_call.1} parent=1 // pred_fallthru
      _
    // Predicated region
    $region22: #{tpu_custom_call.1} parent=1 // pred_check
      _
    $region23: #{tpu_custom_call.1} parent=1 // pred_check_branch
      %54 = sbr.rel (0) target = $region25
    $region24: #{tpu_custom_call.1} parent=1 // pred_region
      %55 = dma.done [#allocation6], 256
    $region25: #{tpu_custom_call.1} parent=1 // pred_fallthru
      _
    %v57 = vld [vmem:[#allocation2] sm:$0xf]
    %v58 = vld [vmem:[#allocation2 + $0x4] sm:$0xf]
    %v59 = vld [vmem:[#allocation5] sm:$0xf]
    %v60 = vld [vmem:[#allocation5 + $0x4] sm:$0xf]
    %v61 = vld [vmem:[#allocation5 + $0x8] sm:$0xf]
    %v62 = vld [vmem:[#allocation5 + $0xc] sm:$0xf]
    %v63 = vld [vmem:[#allocation7] sm:$0xff]
    %v64 = vld [vmem:[#allocation7 + $0x8] sm:$0xff]
    %v67 = vunpack.c.l.b16 %v57
    %v68 = vunpack.c.l.b16 %v58
    %v69 = vpack.c.b16 %v68, %v67
    %v74 = vunpack.c.l.b16 %v59
    %v75 = vunpack.c.l.b16 %v60
    %v76 = vunpack.c.l.b16 %v61
    %v77 = vunpack.c.l.b16 %v62
    %v78 = vpack.c.b16 %v75, %v74
    %v79 = vpack.c.b16 %v77, %v76
    %vm82 = vcmask 261120
    %v84 = vsel %vm82, %v69, 0
    %86 = vmatprep.subr.bf16.mxu0 0
    %87 = vmatpush1.bf16.msra.mxu0 0
    %88 = vmatprep.subr.bf16.mxu0 0
    %89 = vmatpush1.bf16.msra.mxu0 0
    %90 = vmatprep.subr.bf16.mxu0 0
    %91 = vmatpush1.bf16.msra.mxu0 0
    %92 = vmatprep.subr.bf16.mxu0 0
    %93 = vmatpush1.bf16.msra.mxu0 0
    %94 = vmatprep.subr.bf16.mxu0 0
    %95 = vmatpush1.bf16.msra.mxu0 0
    %96 = vmatprep.subr.bf16.mxu0 0
    %97 = vmatpush1.bf16.msra.mxu0 0
    %98 = vmatprep.subr.bf16.mxu0 0
    %99 = vmatpush1.bf16.msra.mxu0 %v79
    %100 = vmatprep.subr.bf16.mxu0 0
    %101 = vmatpush1.bf16.msra.mxu0 %v78
    %102 = vmatprep.subr.bf16.mxu0 0
    %103 = vmatpush2.bf16.msra.mxu0 0
    %104 = vmatprep.subr.bf16.mxu0 0
    %105 = vmatpush2.bf16.msra.mxu0 0
    %106 = vmatprep.subr.bf16.mxu0 0
    %107 = vmatpush2.bf16.msra.mxu0 0
    %108 = vmatprep.subr.bf16.mxu0 0
    %109 = vmatpush2.bf16.msra.mxu0 0
    %110 = vmatprep.subr.bf16.mxu0 0
    %111 = vmatpush2.bf16.msra.mxu0 0
    %112 = vmatprep.subr.bf16.mxu0 0
    %113 = vmatpush2.bf16.msra.mxu0 0
    %114 = vmatprep.subr.bf16.mxu0 0
    %115 = vmatpush2.bf16.msra.mxu0 0
    %116 = vmatprep.subr.bf16.mxu0 0
    %117 = vmatpush2.bf16.msra.mxu0 0
    %118 = vmatprep.mubr.bf16.mxu0 0
    %119 = vmatmul.mubr.bf16.gmra.mxu0 %v84
    %v120 = vpop.f32.mrf.mxu0
    %v121 = vadd.f32 0.0, %v120
    %v122 = vpop.f32.mrf.mxu0
    %v123 = vpop.f32.mrf.mxu0
    %v124 = vadd.f32 0.0, %v123
    %v125 = vpop.f32.mrf.mxu0
    %126 = vdwg.mxu0
    %v127 = vpack.c.bf16 %v124, %v121
    %129 = vrot.lane.b32.xlu0 %v127, 112
    %v130 = vpop.permute.xlu0 %129
    %vm131 = vcmask 130048
    %v133 = vsel %vm131, %v127, 0
    %v136 = vsel %vm131, %v130, 0
    %138 = vmatprep.subr.bf16.mxu0 0
    %139 = vmatpush1.bf16.xpose.msra.mxu0 0
    %140 = vmatprep.subr.bf16.mxu0 0
    %141 = vmatpush1.bf16.xpose.msra.mxu0 0
    %142 = vmatprep.subr.bf16.mxu0 0
    %143 = vmatpush1.bf16.xpose.msra.mxu0 0
    %144 = vmatprep.subr.bf16.mxu0 0
    %145 = vmatpush1.bf16.xpose.msra.mxu0 0
    %146 = vmatprep.subr.bf16.mxu0 0
    %147 = vmatpush1.bf16.xpose.msra.mxu0 0
    %148 = vmatprep.subr.bf16.mxu0 0
    %149 = vmatpush1.bf16.xpose.msra.mxu0 0
    %150 = vmatprep.subr.bf16.mxu0 0
    %151 = vmatpush1.bf16.xpose.msra.mxu0 0
    %152 = vmatprep.subr.bf16.mxu0 0
    %153 = vmatpush1.bf16.xpose.msra.mxu0 %v136
    %154 = vmatprep.subr.bf16.mxu0 0
    %155 = vmatpush2.bf16.xpose.msra.mxu0 0
    %156 = vmatprep.subr.bf16.mxu0 0
    %157 = vmatpush2.bf16.xpose.msra.mxu0 0
    %158 = vmatprep.subr.bf16.mxu0 0
    %159 = vmatpush2.bf16.xpose.msra.mxu0 0
    %160 = vmatprep.subr.bf16.mxu0 0
    %161 = vmatpush2.bf16.xpose.msra.mxu0 0
    %162 = vmatprep.subr.bf16.mxu0 0
    %163 = vmatpush2.bf16.xpose.msra.mxu0 0
    %164 = vmatprep.subr.bf16.mxu0 0
    %165 = vmatpush2.bf16.xpose.msra.mxu0 0
    %166 = vmatprep.subr.bf16.mxu0 0
    %167 = vmatpush2.bf16.xpose.msra.mxu0 0
    %168 = vmatprep.subr.bf16.mxu0 0
    %169 = vmatpush2.bf16.xpose.msra.mxu0 0
    %170 = vmatprep.mubr.bf16.mxu0 0
    %171 = vmatmul.mubr.bf16.gmra.mxu0 %v133
    %v172 = vpop.f32.mrf.mxu0
    %v173 = vadd.f32 %v63, %v172
    %v174 = vpop.f32.mrf.mxu0
    %v175 = vpop.f32.mrf.mxu0
    %v176 = vadd.f32 %v64, %v175
    %v177 = vpop.f32.mrf.mxu0
    %178 = vdwg.mxu0
    %v179 = vsel %vm131, %v173, -inf
    %180 = vmax.xlane.f32.xlu0 %v179
    %v181 = vpop.xlane.xlu0 %180
    %v182 = vsel %vm131, %v176, -inf
    %183 = vmax.xlane.f32.xlu0 %v182
    %v184 = vpop.xlane.xlu0 %183
    %v185 = vsub.f32 %v173, %v181
    %v186 = vsub.f32 %v176, %v184
    %v187 = vmul.f32 %v185, 1.442695
    %v188 = vpow.pop %v187
    %v189 = vmul.f32 %v186, 1.442695
    %v190 = vpow.pop %v189
    %v191 = vsel %vm131, %v188, 0.0
    %192 = vadd.xlane.f32.xlu0 %v191
    %v193 = vpop.xlane.xlu0 %192
    %v194 = vsel %vm131, %v190, 0.0
    %195 = vadd.xlane.f32.xlu0 %v194
    %v196 = vpop.xlane.xlu0 %195
    %v197 = vrcp.pop %v193
    %v198 = vrcp.pop %v196
    %v199 = vmul.f32 %v188, %v197
    %v200 = vmul.f32 %v190, %v198
    %v201 = vpack.c.bf16 %v200, %v199
    %202 = vrot.lane.b32.xlu0 %v127, 96
    %v203 = vpop.permute.xlu0 %202
    %v206 = vsel %vm131, %v201, 0
    %208 = vmatprep.subr.bf16.mxu0 0
    %209 = vmatpush1.bf16.msra.mxu0 0
    %210 = vmatprep.subr.bf16.mxu0 0
    %211 = vmatpush1.bf16.msra.mxu0 0
    %212 = vmatprep.subr.bf16.mxu0 0
    %213 = vmatpush1.bf16.msra.mxu0 0
    %214 = vmatprep.subr.bf16.mxu0 0
    %215 = vmatpush1.bf16.msra.mxu0 0
    %216 = vmatprep.subr.bf16.mxu0 0
    %217 = vmatpush1.bf16.msra.mxu0 0
    %218 = vmatprep.subr.bf16.mxu0 0
    %219 = vmatpush1.bf16.msra.mxu0 0
    %220 = vmatprep.subr.bf16.mxu0 0
    %221 = vmatpush1.bf16.msra.mxu0 0
    %222 = vmatprep.subr.bf16.mxu0 0
    %223 = vmatpush1.bf16.msra.mxu0 %v203
    %224 = vmatprep.subr.bf16.mxu0 0
    %225 = vmatpush2.bf16.msra.mxu0 0
    %226 = vmatprep.subr.bf16.mxu0 0
    %227 = vmatpush2.bf16.msra.mxu0 0
    %228 = vmatprep.subr.bf16.mxu0 0
    %229 = vmatpush2.bf16.msra.mxu0 0
    %230 = vmatprep.subr.bf16.mxu0 0
    %231 = vmatpush2.bf16.msra.mxu0 0
    %232 = vmatprep.subr.bf16.mxu0 0
    %233 = vmatpush2.bf16.msra.mxu0 0
    %234 = vmatprep.subr.bf16.mxu0 0
    %235 = vmatpush2.bf16.msra.mxu0 0
    %236 = vmatprep.subr.bf16.mxu0 0
    %237 = vmatpush2.bf16.msra.mxu0 0
    %238 = vmatprep.subr.bf16.mxu0 0
    %239 = vmatpush2.bf16.msra.mxu0 0
    %240 = vmatprep.mubr.bf16.mxu0 0
    %241 = vmatmul.mubr.bf16.gmra.mxu0 %v206
    %v242 = vpop.f32.mrf.mxu0
    %v243 = vadd.f32 0.0, %v242
    %v244 = vpop.f32.mrf.mxu0
    %v245 = vpop.f32.mrf.mxu0
    %v246 = vadd.f32 0.0, %v245
    %v247 = vpop.f32.mrf.mxu0
    %248 = vdwg.mxu0
    %v249 = vpack.c.bf16 %v246, %v243
    %v251 = vunpack.c.l.b16 %v249
    %v252 = vunpack.c.h.b16 %v249
    %v253 = vpack.c.b16 %v251, %v251
    %v254 = vpack.c.b16 %v252, %v252
    %vm257 = vcmask 125952
    %258 = vst.msk [vmem:[#allocation8] sm:$0xf] %vm257, %v253
    %259 = vst.msk [vmem:[#allocation8 + $0x4] sm:$0xf] %vm257, %v254
    // Predicated region
    $region26: #{tpu_custom_call.1} parent=1 // pred_check
      _
    $region27: #{tpu_custom_call.1} parent=1 // pred_check_branch
      %261 = sbr.rel (0) target = $region29
    $region28: #{tpu_custom_call.1} parent=1 // pred_region
      %s263 = ssub.s32 128, 128
      %264 = vsyncadd [#allocation4], %s263
      %s265 = sshll.u32 [#allocation8], 4
      %s266 = int_to_ptr.vmem [resolvable:$true] %s265
      %271 = dma.vmem_to_hbm [thread:$0]  %s266, 128, %s3, [#allocation4], 64, 64, 4
    $region29: #{tpu_custom_call.1} parent=1 // pred_fallthru
      _
    // Predicated region
    $region30: #{tpu_custom_call.1} parent=1 // pred_check
      _
    $region31: #{tpu_custom_call.1} parent=1 // pred_check_branch
      %273 = sbr.rel (0) target = $region33
    $region32: #{tpu_custom_call.1} parent=1 // pred_region
      %274 = dma.done [#allocation4], 128
    $region33: #{tpu_custom_call.1} parent=1 // pred_fallthru
      _
    %275 = vsyncpa [#allocation3], 1
    %276 = vsyncpa [#allocation6], 1
    %277 = vsyncpa [#allocation4], 1

</llo_original>
